<compile_context>
chip_gen: v7x
topology: tpu7x:2x2x1
jax: 0.10.0
libtpu: 0.0.40
codegen_flags: <defaults>
</compile_context>

<pallas_src>
import functools

import jax
import jax.numpy as jnp
import numpy as np
from jax.experimental import pallas as pl
from jax.experimental.pallas import tpu as pltpu


# ------------------------------ fused kernel ------------------------------- #

def _inception_kernel(x_ref, hp_ref, wp_ref, w1_ref, b1_ref, w2_ref, b2_ref,
                      o_ref, *, N, H, W, c_b1):
    P = H * W
    NP = N * P

    hp = hp_ref[...]                       # (1, NP) int32, row index of pixel
    wp = wp_ref[...]                       # (1, NP) int32, col index of pixel

    # Batch folded onto the lane axis: X is (Cin, N*H*W), pixels lane-dense.
    # Each image is a 256-lane (2 lane-tile) aligned slab -> cheap concat.
    X = jnp.concatenate([x_ref[n] for n in range(N)], axis=1)     # (Cin, NP) f32

    # ---- stage 1: merged 1x1 convs (branch1 + branch2a + branch3a) --------
    y1 = jnp.dot(w1_ref[...], X.astype(jnp.bfloat16),
                 preferred_element_type=jnp.float32)              # (18, NP)
    y1 = jnp.maximum(y1 + b1_ref[...], 0.0)
    b1o = y1[:c_b1]                        # branch1 output        (8, NP)
    t23 = y1[c_b1:]                        # [t2 | t3] slab        (10, NP)

    # ---- branch4 pooling: separable 3x3 max, lane rolls + iota masks ------
    neg = jnp.finfo(jnp.float32).min
    left = jnp.where(wp >= 1, pltpu.roll(X, 1, axis=1), neg)          # x[w-1]
    right = jnp.where(wp <= W - 2, pltpu.roll(X, NP - 1, axis=1), neg)  # x[w+1]
    m1 = jnp.maximum(X, jnp.maximum(left, right))
    up = jnp.where(hp >= 1, pltpu.roll(m1, W, axis=1), neg)           # m1[h-1]
    down = jnp.where(hp <= H - 2, pltpu.roll(m1, NP - W, axis=1), neg)  # m1[h+1]
    mp = jnp.maximum(m1, jnp.maximum(up, down))                   # (Cin, NP)

    # ---- stage 2: ONE block-diagonal dot for 3x3(b2b) + 3x3(b3b) + 1x1(b4).
    # K rows = 9 shifted copies of the [t2|t3] slab (zero-padded taps), then
    # the Cin pooled channels.  Shifts are lane rolls, boundaries are masked.
    pieces = []
    for kh in range(3):
        for kw in range(3):
            dy, dx = kh - 1, kw - 1
            shift = (-(dy * W + dx)) % NP
            s = t23 if shift == 0 else pltpu.roll(t23, shift, axis=1)
            conds = []
            if dy == -1:
                conds.append(hp >= 1)
            if dy == 1:
                conds.append(hp <= H - 2)
            if dx == -1:
                conds.append(wp >= 1)
            if dx == 1:
                conds.append(wp <= W - 2)
            if conds:
                ok = conds[0]
                for c in conds[1:]:
                    ok = jnp.logical_and(ok, c)
                s = jnp.where(ok, s, 0.0)
            pieces.append(s)
    pieces.append(mp)
    col = jnp.concatenate(pieces, axis=0)                # (9*10 + Cin, NP) f32

    y2 = jnp.dot(w2_ref[...], col.astype(jnp.bfloat16),
                 preferred_element_type=jnp.float32)     # (24, NP)
    y2 = jnp.maximum(y2 + b2_ref[...], 0.0)

    # ---- writeback: aligned, lane-dense full-tile stores ------------------
    for n in range(N):
        o_ref[n, :c_b1, :] = b1o[:, n * P:(n + 1) * P]
        o_ref[n, c_b1:, :] = y2[:, n * P:(n + 1) * P]


# ------------------------------ forward (Pallas) ---------------------------- #

def inception_block_forward(x_nchw, p):
    N, Cin, H, W = x_nchw.shape
    P = H * W

    c_b1 = p["b1"]["w"].shape[-1]
    c_b2a = p["b2a"]["w"].shape[-1]
    c_b2b = p["b2b"]["w"].shape[-1]
    c_b3a = p["b3a"]["w"].shape[-1]
    c_b3b = p["b3b"]["w"].shape[-1]
    c_b4 = p["b4"]["w"].shape[-1]
    c_b23 = c_b2a + c_b3a
    c_s2 = c_b2b + c_b3b + c_b4
    c_tot = c_b1 + c_s2

    # Stage-1 weight: merged 1x1 convs, BN scale folded, transposed so the
    # matmul result lands channels-on-sublane / pixels-on-lane.
    w1 = jnp.concatenate([
        p["b1"]["w"][0, 0] * p["b1"]["scale"],
        p["b2a"]["w"][0, 0] * p["b2a"]["scale"],
        p["b3a"]["w"][0, 0] * p["b3a"]["scale"],
    ], axis=-1).T.astype(jnp.bfloat16)                          # (18, Cin)
    bias1 = jnp.concatenate(
        [p["b1"]["bias"], p["b2a"]["bias"], p["b3a"]["bias"]])[:, None]  # (18,1)

    # Stage-2 block-diagonal weight in final channel order [b2b | b3b | b4];
    # K layout = 9 taps x [t2 | t3] channels, then Cin pooled channels.
    w2b = p["b2b"]["w"] * p["b2b"]["scale"]                     # (3,3,c2a,c2b)
    w3b = p["b3b"]["w"] * p["b3b"]["scale"]                     # (3,3,c3a,c3b)
    blk = jnp.zeros((3, 3, c_b23, c_b2b + c_b3b), jnp.float32)
    blk = blk.at[:, :, :c_b2a, :c_b2b].set(w2b)
    blk = blk.at[:, :, c_b2a:, c_b2b:].set(w3b)
    w4 = p["b4"]["w"][0, 0] * p["b4"]["scale"]                  # (Cin, c_b4)
    w2 = jnp.zeros((9 * c_b23 + Cin, c_s2), jnp.float32)
    w2 = w2.at[:9 * c_b23, :c_b2b + c_b3b].set(
        blk.reshape(9 * c_b23, c_b2b + c_b3b))
    w2 = w2.at[9 * c_b23:, c_b2b + c_b3b:].set(w4)
    w2 = w2.T.astype(jnp.bfloat16)                              # (24, 94)
    bias2 = jnp.concatenate(
        [p["b2b"]["bias"], p["b3b"]["bias"], p["b4"]["bias"]])[:, None]  # (24,1)

    # Host-side pixel coordinate iotas (avoid in-kernel integer div/mod).
    pix = jnp.arange(N * P, dtype=jnp.int32) % P
    hpos = (pix // W).reshape(1, N * P)
    wpos = (pix % W).reshape(1, N * P)

    x2 = x_nchw.reshape(N, Cin, P)        # NCHW view: free, no transpose

    kernel = functools.partial(_inception_kernel, N=N, H=H, W=W, c_b1=c_b1)
    vmem = pl.BlockSpec(memory_space=pltpu.MemorySpace.VMEM)

    out = pl.pallas_call(
        kernel,
        out_shape=jax.ShapeDtypeStruct((N, c_tot, P), jnp.float32),
        in_specs=[vmem] * 7,
        out_specs=vmem,
        compiler_params=pltpu.CompilerParams(
            vmem_limit_bytes=32 * 1024 * 1024),
    )(x2, hpos, wpos, w1, bias1, w2, bias2)

    return out.reshape(N, c_tot, H, W)    # already NCHW: free reshape only


# --------------------------- parameter generation --------------------------- #

def make_convblock_params(key, cin, cout, k):
    kw, kg, kb, km, kv = jax.random.split(key, 5)
    w = jax.random.normal(kw, (k, k, cin, cout), jnp.float32) * 0.1  # HWIO
    gamma = 1.0 + 0.1 * jax.random.normal(kg, (cout,), jnp.float32)
    beta = 0.1 * jax.random.normal(kb, (cout,), jnp.float32)
    mean = 0.05 * jax.random.normal(km, (cout,), jnp.float32)
    var = 0.5 + 0.1 * jnp.abs(jax.random.normal(kv, (cout,), jnp.float32))
    eps = 1e-3
    scale = gamma / jnp.sqrt(var + eps)
    bias = beta - mean * scale
    return {"w": w, "scale": scale, "bias": bias}


def make_inception_params(key, in_channels, branch_channels):
    keys = jax.random.split(key, 6)
    b1 = branch_channels[0]
    b2a, b2b = branch_channels[1]
    b3a, b3b = branch_channels[2]
    b4 = branch_channels[3]
    return {
        "b1":  make_convblock_params(keys[0], in_channels, b1, 1),
        "b2a": make_convblock_params(keys[1], in_channels, b2a, 1),
        "b2b": make_convblock_params(keys[2], b2a, b2b, 3),
        "b3a": make_convblock_params(keys[3], in_channels, b3a, 1),
        "b3b": make_convblock_params(keys[4], b3a, b3b, 3),
        "b4":  make_convblock_params(keys[5], in_channels, b4, 1),
    }


# ------------------------------ pure-JAX reference -------------------------- #

def _ref_convblock(x_nhwc, w_hwio, scale, bias, padding):
    y = jax.lax.conv_general_dilated(
        x_nhwc, w_hwio, window_strides=(1, 1),
        padding=[(padding, padding), (padding, padding)],
        dimension_numbers=("NHWC", "HWIO", "NHWC"))
    return jnp.maximum(y * scale + bias, 0.0)


def _ref_maxpool3x3(x_nhwc):
    return jax.lax.reduce_window(
        x_nhwc, -jnp.inf, jax.lax.max, (1, 3, 3, 1), (1, 1, 1, 1),
        [(0, 0), (1, 1), (1, 1), (0, 0)])


def inception_block_reference(x_nchw, p):
    x = jnp.transpose(x_nchw, (0, 2, 3, 1))
    b1 = _ref_convblock(x, p["b1"]["w"], p["b1"]["scale"], p["b1"]["bias"], 0)
    t2 = _ref_convblock(x, p["b2a"]["w"], p["b2a"]["scale"], p["b2a"]["bias"], 0)
    b2 = _ref_convblock(t2, p["b2b"]["w"], p["b2b"]["scale"], p["b2b"]["bias"], 1)
    t3 = _ref_convblock(x, p["b3a"]["w"], p["b3a"]["scale"], p["b3a"]["bias"], 0)
    b3 = _ref_convblock(t3, p["b3b"]["w"], p["b3b"]["scale"], p["b3b"]["bias"], 1)
    b4 = _ref_convblock(_ref_maxpool3x3(x), p["b4"]["w"], p["b4"]["scale"],
                        p["b4"]["bias"], 0)
    out = jnp.concatenate([b1, b2, b3, b4], axis=-1)
    return jnp.transpose(out, (0, 3, 1, 2))


# ----------------------------------- main ----------------------------------- #

if __name__ == "__main__":
    key = jax.random.PRNGKey(0)
    kx, kp = jax.random.split(key)

    N, C, H, W = 2, 4, 16, 16
    branch_channels = (8, (6, 8), (4, 8), 8)   # sum of branch outputs = 32

    x = jax.random.normal(kx, (N, C, H, W), jnp.float32)
    params = make_inception_params(kp, C, branch_channels)

    out = jax.block_until_ready(inception_block_forward(x, params))
    ref = jax.block_until_ready(inception_block_reference(x, params))

    assert out.shape == (N, 32, H, W), out.shape
    # Tolerance loosened for bf16 dot operands (f32 accumulation kept).
    np.testing.assert_allclose(np.asarray(out), np.asarray(ref),
                               rtol=2e-2, atol=3e-2)
    print("KERNEL_OK")
</pallas_src>

<mosaic_0001>
module attributes {stable_mosaic.version = 11 : i64} {
  func.func @_inception_kernel(%arg0: memref<2x4x256xf32, #tpu.memory_space<vmem>>, %arg1: memref<1x512xi32, #tpu.memory_space<vmem>>, %arg2: memref<1x512xi32, #tpu.memory_space<vmem>>, %arg3: memref<18x4xbf16, #tpu.memory_space<vmem>>, %arg4: memref<18x1xf32, #tpu.memory_space<vmem>>, %arg5: memref<24x94xbf16, #tpu.memory_space<vmem>>, %arg6: memref<24x1xf32, #tpu.memory_space<vmem>>, %arg7: memref<2x32x256xf32, #tpu.memory_space<vmem>>) attributes {dimension_semantics = [], scalar_prefetch = 0 : i64, scratch_operands = 0 : i64, tpu.core_type = #tpu.core_type<tc>} {
    %c0 = arith.constant 0 : index
    %c0_0 = arith.constant 0 : index
    %0 = vector.load %arg1[%c0, %c0_0] : memref<1x512xi32, #tpu.memory_space<vmem>>, vector<1x512xi32>
    %c0_1 = arith.constant 0 : index
    %c0_2 = arith.constant 0 : index
    %1 = vector.load %arg2[%c0_1, %c0_2] : memref<1x512xi32, #tpu.memory_space<vmem>>, vector<1x512xi32>
    %c0_3 = arith.constant 0 : index
    %c0_4 = arith.constant 0 : index
    %c0_5 = arith.constant 0 : index
    %2 = vector.load %arg0[%c0_3, %c0_4, %c0_5] : memref<2x4x256xf32, #tpu.memory_space<vmem>>, vector<1x4x256xf32>
    %3 = vector.shape_cast %2 : vector<1x4x256xf32> to vector<4x256xf32>
    %c1 = arith.constant 1 : index
    %c0_6 = arith.constant 0 : index
    %c0_7 = arith.constant 0 : index
    %4 = vector.load %arg0[%c1, %c0_6, %c0_7] : memref<2x4x256xf32, #tpu.memory_space<vmem>>, vector<1x4x256xf32>
    %5 = vector.shape_cast %4 : vector<1x4x256xf32> to vector<4x256xf32>
    %6 = tpu.concatenate %3, %5 in 1 : vector<4x256xf32>, vector<4x256xf32> -> vector<4x512xf32>
    %c0_8 = arith.constant 0 : index
    %c0_9 = arith.constant 0 : index
    %7 = vector.load %arg3[%c0_8, %c0_9] : memref<18x4xbf16, #tpu.memory_space<vmem>>, vector<18x4xbf16>
    %8 = arith.truncf %6 : vector<4x512xf32> to vector<4x512xbf16>
    %cst = arith.constant dense<0.000000e+00> : vector<18x512xf32>
    %9 = tpu.matmul %7, %8, %cst {dimension_numbers = #tpu.dot_dimension_numbers<[1], [0], [0], [1], [0, 0, 1, 1], [], []>} : vector<18x4xbf16>, vector<4x512xbf16>, vector<18x512xf32> -> vector<18x512xf32>
    %c0_10 = arith.constant 0 : index
    %c0_11 = arith.constant 0 : index
    %10 = vector.load %arg4[%c0_10, %c0_11] : memref<18x1xf32, #tpu.memory_space<vmem>>, vector<18x1xf32>
    %11 = vector.broadcast %10 : vector<18x1xf32> to vector<18x512xf32>
    %12 = arith.addf %9, %11 : vector<18x512xf32>
    %cst_12 = arith.constant 0.000000e+00 : f32
    %13 = vector.broadcast %cst_12 : f32 to vector<18x512xf32>
    %14 = arith.maximumf %12, %13 : vector<18x512xf32>
    %15 = vector.extract_strided_slice %14 {offsets = [0, 0], sizes = [8, 512], strides = [1, 1]} : vector<18x512xf32> to vector<8x512xf32>
    %16 = vector.extract_strided_slice %14 {offsets = [8, 0], sizes = [10, 512], strides = [1, 1]} : vector<18x512xf32> to vector<10x512xf32>
    %c1_i32 = arith.constant 1 : i32
    %17 = vector.broadcast %c1_i32 : i32 to vector<1x512xi32>
    %18 = arith.cmpi sge, %1, %17 : vector<1x512xi32>
    %c1_i32_13 = arith.constant 1 : i32
    %19 = tpu.dynamic_rotate %6 by %c1_i32_13 dim 1 : vector<4x512xf32>, i32 -> vector<4x512xf32>
    %cst_14 = arith.constant -3.40282347E+38 : f32
    %20 = vector.shape_cast %18 : vector<1x512xi1> to vector<1x512xi1>
    %21 = vector.broadcast %20 : vector<1x512xi1> to vector<4x512xi1>
    %22 = vector.broadcast %cst_14 : f32 to vector<4x512xf32>
    %23 = arith.select %21, %19, %22 : vector<4x512xi1>, vector<4x512xf32>
    %c14_i32 = arith.constant 14 : i32
    %24 = vector.broadcast %c14_i32 : i32 to vector<1x512xi32>
    %25 = arith.cmpi sle, %1, %24 : vector<1x512xi32>
    %c511_i32 = arith.constant 511 : i32
    %26 = tpu.dynamic_rotate %6 by %c511_i32 dim 1 : vector<4x512xf32>, i32 -> vector<4x512xf32>
    %cst_15 = arith.constant -3.40282347E+38 : f32
    %27 = vector.shape_cast %25 : vector<1x512xi1> to vector<1x512xi1>
    %28 = vector.broadcast %27 : vector<1x512xi1> to vector<4x512xi1>
    %29 = vector.broadcast %cst_15 : f32 to vector<4x512xf32>
    %30 = arith.select %28, %26, %29 : vector<4x512xi1>, vector<4x512xf32>
    %31 = arith.maximumf %23, %30 : vector<4x512xf32>
    %32 = arith.maximumf %6, %31 : vector<4x512xf32>
    %c1_i32_16 = arith.constant 1 : i32
    %33 = vector.broadcast %c1_i32_16 : i32 to vector<1x512xi32>
    %34 = arith.cmpi sge, %0, %33 : vector<1x512xi32>
    %c16_i32 = arith.constant 16 : i32
    %35 = tpu.dynamic_rotate %32 by %c16_i32 dim 1 : vector<4x512xf32>, i32 -> vector<4x512xf32>
    %cst_17 = arith.constant -3.40282347E+38 : f32
    %36 = vector.shape_cast %34 : vector<1x512xi1> to vector<1x512xi1>
    %37 = vector.broadcast %36 : vector<1x512xi1> to vector<4x512xi1>
    %38 = vector.broadcast %cst_17 : f32 to vector<4x512xf32>
    %39 = arith.select %37, %35, %38 : vector<4x512xi1>, vector<4x512xf32>
    %c14_i32_18 = arith.constant 14 : i32
    %40 = vector.broadcast %c14_i32_18 : i32 to vector<1x512xi32>
    %41 = arith.cmpi sle, %0, %40 : vector<1x512xi32>
    %c496_i32 = arith.constant 496 : i32
    %42 = tpu.dynamic_rotate %32 by %c496_i32 dim 1 : vector<4x512xf32>, i32 -> vector<4x512xf32>
    %cst_19 = arith.constant -3.40282347E+38 : f32
    %43 = vector.shape_cast %41 : vector<1x512xi1> to vector<1x512xi1>
    %44 = vector.broadcast %43 : vector<1x512xi1> to vector<4x512xi1>
    %45 = vector.broadcast %cst_19 : f32 to vector<4x512xf32>
    %46 = arith.select %44, %42, %45 : vector<4x512xi1>, vector<4x512xf32>
    %47 = arith.maximumf %39, %46 : vector<4x512xf32>
    %48 = arith.maximumf %32, %47 : vector<4x512xf32>
    %c17_i32 = arith.constant 17 : i32
    %49 = tpu.dynamic_rotate %16 by %c17_i32 dim 1 : vector<10x512xf32>, i32 -> vector<10x512xf32>
    %c1_i32_20 = arith.constant 1 : i32
    %50 = vector.broadcast %c1_i32_20 : i32 to vector<1x512xi32>
    %51 = arith.cmpi sge, %0, %50 : vector<1x512xi32>
    %c1_i32_21 = arith.constant 1 : i32
    %52 = vector.broadcast %c1_i32_21 : i32 to vector<1x512xi32>
    %53 = arith.cmpi sge, %1, %52 : vector<1x512xi32>
    %54 = arith.andi %51, %53 : vector<1x512xi1>
    %cst_22 = arith.constant 0.000000e+00 : f32
    %55 = vector.shape_cast %54 : vector<1x512xi1> to vector<1x512xi1>
    %56 = vector.broadcast %55 : vector<1x512xi1> to vector<10x512xi1>
    %57 = vector.broadcast %cst_22 : f32 to vector<10x512xf32>
    %58 = arith.select %56, %49, %57 : vector<10x512xi1>, vector<10x512xf32>
    %c16_i32_23 = arith.constant 16 : i32
    %59 = tpu.dynamic_rotate %16 by %c16_i32_23 dim 1 : vector<10x512xf32>, i32 -> vector<10x512xf32>
    %c1_i32_24 = arith.constant 1 : i32
    %60 = vector.broadcast %c1_i32_24 : i32 to vector<1x512xi32>
    %61 = arith.cmpi sge, %0, %60 : vector<1x512xi32>
    %cst_25 = arith.constant 0.000000e+00 : f32
    %62 = vector.shape_cast %61 : vector<1x512xi1> to vector<1x512xi1>
    %63 = vector.broadcast %62 : vector<1x512xi1> to vector<10x512xi1>
    %64 = vector.broadcast %cst_25 : f32 to vector<10x512xf32>
    %65 = arith.select %63, %59, %64 : vector<10x512xi1>, vector<10x512xf32>
    %c15_i32 = arith.constant 15 : i32
    %66 = tpu.dynamic_rotate %16 by %c15_i32 dim 1 : vector<10x512xf32>, i32 -> vector<10x512xf32>
    %c1_i32_26 = arith.constant 1 : i32
    %67 = vector.broadcast %c1_i32_26 : i32 to vector<1x512xi32>
    %68 = arith.cmpi sge, %0, %67 : vector<1x512xi32>
    %c14_i32_27 = arith.constant 14 : i32
    %69 = vector.broadcast %c14_i32_27 : i32 to vector<1x512xi32>
    %70 = arith.cmpi sle, %1, %69 : vector<1x512xi32>
    %71 = arith.andi %68, %70 : vector<1x512xi1>
    %cst_28 = arith.constant 0.000000e+00 : f32
    %72 = vector.shape_cast %71 : vector<1x512xi1> to vector<1x512xi1>
    %73 = vector.broadcast %72 : vector<1x512xi1> to vector<10x512xi1>
    %74 = vector.broadcast %cst_28 : f32 to vector<10x512xf32>
    %75 = arith.select %73, %66, %74 : vector<10x512xi1>, vector<10x512xf32>
    %c1_i32_29 = arith.constant 1 : i32
    %76 = tpu.dynamic_rotate %16 by %c1_i32_29 dim 1 : vector<10x512xf32>, i32 -> vector<10x512xf32>
    %c1_i32_30 = arith.constant 1 : i32
    %77 = vector.broadcast %c1_i32_30 : i32 to vector<1x512xi32>
    %78 = arith.cmpi sge, %1, %77 : vector<1x512xi32>
    %cst_31 = arith.constant 0.000000e+00 : f32
    %79 = vector.shape_cast %78 : vector<1x512xi1> to vector<1x512xi1>
    %80 = vector.broadcast %79 : vector<1x512xi1> to vector<10x512xi1>
    %81 = vector.broadcast %cst_31 : f32 to vector<10x512xf32>
    %82 = arith.select %80, %76, %81 : vector<10x512xi1>, vector<10x512xf32>
    %c511_i32_32 = arith.constant 511 : i32
    %83 = tpu.dynamic_rotate %16 by %c511_i32_32 dim 1 : vector<10x512xf32>, i32 -> vector<10x512xf32>
    %c14_i32_33 = arith.constant 14 : i32
    %84 = vector.broadcast %c14_i32_33 : i32 to vector<1x512xi32>
    %85 = arith.cmpi sle, %1, %84 : vector<1x512xi32>
    %cst_34 = arith.constant 0.000000e+00 : f32
    %86 = vector.shape_cast %85 : vector<1x512xi1> to vector<1x512xi1>
    %87 = vector.broadcast %86 : vector<1x512xi1> to vector<10x512xi1>
    %88 = vector.broadcast %cst_34 : f32 to vector<10x512xf32>
    %89 = arith.select %87, %83, %88 : vector<10x512xi1>, vector<10x512xf32>
    %c497_i32 = arith.constant 497 : i32
    %90 = tpu.dynamic_rotate %16 by %c497_i32 dim 1 : vector<10x512xf32>, i32 -> vector<10x512xf32>
    %c14_i32_35 = arith.constant 14 : i32
    %91 = vector.broadcast %c14_i32_35 : i32 to vector<1x512xi32>
    %92 = arith.cmpi sle, %0, %91 : vector<1x512xi32>
    %c1_i32_36 = arith.constant 1 : i32
    %93 = vector.broadcast %c1_i32_36 : i32 to vector<1x512xi32>
    %94 = arith.cmpi sge, %1, %93 : vector<1x512xi32>
    %95 = arith.andi %92, %94 : vector<1x512xi1>
    %cst_37 = arith.constant 0.000000e+00 : f32
    %96 = vector.shape_cast %95 : vector<1x512xi1> to vector<1x512xi1>
    %97 = vector.broadcast %96 : vector<1x512xi1> to vector<10x512xi1>
    %98 = vector.broadcast %cst_37 : f32 to vector<10x512xf32>
    %99 = arith.select %97, %90, %98 : vector<10x512xi1>, vector<10x512xf32>
    %c496_i32_38 = arith.constant 496 : i32
    %100 = tpu.dynamic_rotate %16 by %c496_i32_38 dim 1 : vector<10x512xf32>, i32 -> vector<10x512xf32>
    %c14_i32_39 = arith.constant 14 : i32
    %101 = vector.broadcast %c14_i32_39 : i32 to vector<1x512xi32>
    %102 = arith.cmpi sle, %0, %101 : vector<1x512xi32>
    %cst_40 = arith.constant 0.000000e+00 : f32
    %103 = vector.shape_cast %102 : vector<1x512xi1> to vector<1x512xi1>
    %104 = vector.broadcast %103 : vector<1x512xi1> to vector<10x512xi1>
    %105 = vector.broadcast %cst_40 : f32 to vector<10x512xf32>
    %106 = arith.select %104, %100, %105 : vector<10x512xi1>, vector<10x512xf32>
    %c495_i32 = arith.constant 495 : i32
    %107 = tpu.dynamic_rotate %16 by %c495_i32 dim 1 : vector<10x512xf32>, i32 -> vector<10x512xf32>
    %c14_i32_41 = arith.constant 14 : i32
    %108 = vector.broadcast %c14_i32_41 : i32 to vector<1x512xi32>
    %109 = arith.cmpi sle, %0, %108 : vector<1x512xi32>
    %c14_i32_42 = arith.constant 14 : i32
    %110 = vector.broadcast %c14_i32_42 : i32 to vector<1x512xi32>
    %111 = arith.cmpi sle, %1, %110 : vector<1x512xi32>
    %112 = arith.andi %109, %111 : vector<1x512xi1>
    %cst_43 = arith.constant 0.000000e+00 : f32
    %113 = vector.shape_cast %112 : vector<1x512xi1> to vector<1x512xi1>
    %114 = vector.broadcast %113 : vector<1x512xi1> to vector<10x512xi1>
    %115 = vector.broadcast %cst_43 : f32 to vector<10x512xf32>
    %116 = arith.select %114, %107, %115 : vector<10x512xi1>, vector<10x512xf32>
    %117 = tpu.concatenate %58, %65, %75, %82, %16, %89, %99, %106, %116, %48 in 0 : vector<10x512xf32>, vector<10x512xf32>, vector<10x512xf32>, vector<10x512xf32>, vector<10x512xf32>, vector<10x512xf32>, vector<10x512xf32>, vector<10x512xf32>, vector<10x512xf32>, vector<4x512xf32> -> vector<94x512xf32>
    %c0_44 = arith.constant 0 : index
    %c0_45 = arith.constant 0 : index
    %118 = vector.load %arg5[%c0_44, %c0_45] : memref<24x94xbf16, #tpu.memory_space<vmem>>, vector<24x94xbf16>
    %119 = arith.truncf %117 : vector<94x512xf32> to vector<94x512xbf16>
    %cst_46 = arith.constant dense<0.000000e+00> : vector<24x512xf32>
    %120 = tpu.matmul %118, %119, %cst_46 {dimension_numbers = #tpu.dot_dimension_numbers<[1], [0], [0], [1], [0, 0, 1, 1], [], []>} : vector<24x94xbf16>, vector<94x512xbf16>, vector<24x512xf32> -> vector<24x512xf32>
    %c0_47 = arith.constant 0 : index
    %c0_48 = arith.constant 0 : index
    %121 = vector.load %arg6[%c0_47, %c0_48] : memref<24x1xf32, #tpu.memory_space<vmem>>, vector<24x1xf32>
    %122 = vector.broadcast %121 : vector<24x1xf32> to vector<24x512xf32>
    %123 = arith.addf %120, %122 : vector<24x512xf32>
    %cst_49 = arith.constant 0.000000e+00 : f32
    %124 = vector.broadcast %cst_49 : f32 to vector<24x512xf32>
    %125 = arith.maximumf %123, %124 : vector<24x512xf32>
    %126 = vector.extract_strided_slice %15 {offsets = [0, 0], sizes = [8, 256], strides = [1, 1]} : vector<8x512xf32> to vector<8x256xf32>
    %c0_50 = arith.constant 0 : index
    %c0_51 = arith.constant 0 : index
    %c0_52 = arith.constant 0 : index
    %127 = vector.load %arg7[%c0_50, %c0_51, %c0_52] : memref<2x32x256xf32, #tpu.memory_space<vmem>>, vector<1x8x256xf32>
    %128 = vector.shape_cast %127 : vector<1x8x256xf32> to vector<8x256xf32>
    %129 = vector.shape_cast %126 : vector<8x256xf32> to vector<1x8x256xf32>
    tpu.vector_store %arg7[%c0_50, %c0_51, %c0_52], %129 {strides = array<i32>} : memref<2x32x256xf32, #tpu.memory_space<vmem>>, vector<1x8x256xf32>,
    %130 = vector.extract_strided_slice %125 {offsets = [0, 0], sizes = [24, 256], strides = [1, 1]} : vector<24x512xf32> to vector<24x256xf32>
    %c0_53 = arith.constant 0 : index
    %c8 = arith.constant 8 : index
    %c0_54 = arith.constant 0 : index
    %131 = vector.load %arg7[%c0_53, %c8, %c0_54] : memref<2x32x256xf32, #tpu.memory_space<vmem>>, vector<1x24x256xf32>
    %132 = vector.shape_cast %131 : vector<1x24x256xf32> to vector<24x256xf32>
    %133 = vector.shape_cast %130 : vector<24x256xf32> to vector<1x24x256xf32>
    tpu.vector_store %arg7[%c0_53, %c8, %c0_54], %133 {strides = array<i32>} : memref<2x32x256xf32, #tpu.memory_space<vmem>>, vector<1x24x256xf32>,
    %134 = vector.extract_strided_slice %15 {offsets = [0, 256], sizes = [8, 256], strides = [1, 1]} : vector<8x512xf32> to vector<8x256xf32>
    %c1_55 = arith.constant 1 : index
    %c0_56 = arith.constant 0 : index
    %c0_57 = arith.constant 0 : index
    %135 = vector.load %arg7[%c1_55, %c0_56, %c0_57] : memref<2x32x256xf32, #tpu.memory_space<vmem>>, vector<1x8x256xf32>
    %136 = vector.shape_cast %135 : vector<1x8x256xf32> to vector<8x256xf32>
    %137 = vector.shape_cast %134 : vector<8x256xf32> to vector<1x8x256xf32>
    tpu.vector_store %arg7[%c1_55, %c0_56, %c0_57], %137 {strides = array<i32>} : memref<2x32x256xf32, #tpu.memory_space<vmem>>, vector<1x8x256xf32>,
    %138 = vector.extract_strided_slice %125 {offsets = [0, 256], sizes = [24, 256], strides = [1, 1]} : vector<24x512xf32> to vector<24x256xf32>
    %c1_58 = arith.constant 1 : index
    %c8_59 = arith.constant 8 : index
    %c0_60 = arith.constant 0 : index
    %139 = vector.load %arg7[%c1_58, %c8_59, %c0_60] : memref<2x32x256xf32, #tpu.memory_space<vmem>>, vector<1x24x256xf32>
    %140 = vector.shape_cast %139 : vector<1x24x256xf32> to vector<24x256xf32>
    %141 = vector.shape_cast %138 : vector<24x256xf32> to vector<1x24x256xf32>
    tpu.vector_store %arg7[%c1_58, %c8_59, %c0_60], %141 {strides = array<i32>} : memref<2x32x256xf32, #tpu.memory_space<vmem>>, vector<1x24x256xf32>,
    return
  }
}

</mosaic_0001>

<llo_original>
// kernel: tpu_custom_call.1
$region0: #{tpu_custom_call.1}
  #allocation0 [shape = 'u32[]', space=smem, size = 0x4, offset = 0x4, fixed_abs, tag = 'smem constant byte address 0x4 - core index']
  #allocation1 [shape = 'u32[144,128]{1,0:T(1,128)}', space=vmem, size = 0x12000, scoped, tag = 'internal scratch']
  %s0 = inlined_call_operand.vmem [shape: f32[2,4,256], index: 0, kind: input, shape index: {}]
  %s1 = inlined_call_operand.vmem [shape: s32[1,512], index: 1, kind: input, shape index: {}]
  %s2 = inlined_call_operand.vmem [shape: s32[1,512], index: 2, kind: input, shape index: {}]
  %s3 = inlined_call_operand.vmem [shape: bf16[18,4], index: 3, kind: input, shape index: {}]
  %s4 = inlined_call_operand.vmem [shape: f32[18,1], index: 4, kind: input, shape index: {}]
  %s5 = inlined_call_operand.vmem [shape: bf16[24,94], index: 5, kind: input, shape index: {}]
  %s6 = inlined_call_operand.vmem [shape: f32[24,1], index: 6, kind: input, shape index: {}]
  %s7 = inlined_call_operand.hbm [shape: f32[2,32,256], index: 7, kind: output, shape index: {}]
  %s8 = sld [smem:[#allocation0]]
  $region38: #{tpu_custom_call.1} parent=0
    _
  %s10 = ssub.s32 1, %s8
  %s11 = scalar_select 0, %s10, %s8
  $region1: #{tpu_custom_call.1} parent=0
    #allocation2 [shape = 'u8[65536]{0}', space=vmem, size = 0x10000, scoped, tag = 'output window, operand 0, single buffered']
    #allocation3 [shape = 's32[1]{0}', space=sflag, size = 0x4, scoped, tag = 'scoped memory for tpu_custom_call.1']
    %12 = vsyncpa [#allocation3], 0
    // Predicated region
    $region2: #{tpu_custom_call.1} parent=1 // pred_check
      _
    $region3: #{tpu_custom_call.1} parent=1 // pred_check_branch
      %14 = sbr.rel (0) target = $region5
    $region4: #{tpu_custom_call.1} parent=1 // pred_region
      _
    $region5: #{tpu_custom_call.1} parent=1 // pred_fallthru
      _
    // Predicated region
    $region6: #{tpu_custom_call.1} parent=1 // pred_check
      _
    $region7: #{tpu_custom_call.1} parent=1 // pred_check_branch
      %16 = sbr.rel (0) target = $region9
    $region8: #{tpu_custom_call.1} parent=1 // pred_region
      _
    $region9: #{tpu_custom_call.1} parent=1 // pred_fallthru
      _
    // Predicated region
    $region10: #{tpu_custom_call.1} parent=1 // pred_check
      _
    $region11: #{tpu_custom_call.1} parent=1 // pred_check_branch
      %18 = sbr.rel (0) target = $region13
    $region12: #{tpu_custom_call.1} parent=1 // pred_region
      _
    $region13: #{tpu_custom_call.1} parent=1 // pred_fallthru
      _
    // Predicated region
    $region14: #{tpu_custom_call.1} parent=1 // pred_check
      _
    $region15: #{tpu_custom_call.1} parent=1 // pred_check_branch
      %20 = sbr.rel (0) target = $region17
    $region16: #{tpu_custom_call.1} parent=1 // pred_region
      _
    $region17: #{tpu_custom_call.1} parent=1 // pred_fallthru
      _
    // Predicated region
    $region18: #{tpu_custom_call.1} parent=1 // pred_check
      _
    $region19: #{tpu_custom_call.1} parent=1 // pred_check_branch
      %22 = sbr.rel (0) target = $region21
    $region20: #{tpu_custom_call.1} parent=1 // pred_region
      _
    $region21: #{tpu_custom_call.1} parent=1 // pred_fallthru
      _
    // Predicated region
    $region22: #{tpu_custom_call.1} parent=1 // pred_check
      _
    $region23: #{tpu_custom_call.1} parent=1 // pred_check_branch
      %24 = sbr.rel (0) target = $region25
    $region24: #{tpu_custom_call.1} parent=1 // pred_region
      _
    $region25: #{tpu_custom_call.1} parent=1 // pred_fallthru
      _
    // Predicated region
    $region26: #{tpu_custom_call.1} parent=1 // pred_check
      _
    $region27: #{tpu_custom_call.1} parent=1 // pred_check_branch
      %26 = sbr.rel (0) target = $region29
    $region28: #{tpu_custom_call.1} parent=1 // pred_region
      _
    $region29: #{tpu_custom_call.1} parent=1 // pred_fallthru
      _
    %v28 = vld [vmem:[%s1] sm:$0xf]
    %v29 = vld [vmem:[%s2] sm:$0xf]
    %v30 = vld [vmem:[%s0] sm:$0xff]
    %s31 = scalar_lea.vmem %s0, 8
    %v32 = vld [vmem:[%s31] sm:$0xff]
    %v34 = vcombine.high %v30, %v30
    %v37 = vcombine.high %v32, %v32
    %v39 = vld [vmem:[%s3] sm:$0xf]
    %v40 = vld [vmem:[%s3 + $0x4] sm:$0xf]
    %v41 = vld [vmem:[%s3 + $0x8] sm:$0x1]
    %v42 = vpack.c.bf16 %v30, %v30
    %v43 = vpack.c.bf16 %v34, %v34
    %v44 = vpack.c.bf16 %v32, %v32
    %v45 = vpack.c.bf16 %v37, %v37
    %v46 = vld [vmem:[%s4] sm:$0xff]
    %v47 = vld [vmem:[%s4 + $0x8] sm:$0xff]
    %v48 = vld [vmem:[%s4 + $0x10] sm:$0x3]
    %50 = vset.pattern.permute.xlu0 0
    %51 = vperm.xlu0 %50, %v46
    %v52 = vpop.permute.xlu0 %51
    %55 = vset.pattern.permute.xlu0 0
    %56 = vperm.xlu0 %55, %v47
    %v57 = vpop.permute.xlu0 %56
    %60 = vset.pattern.permute.xlu0 0
    %61 = vperm.xlu0 %60, %v48
    %v62 = vpop.permute.xlu0 %61
    %v67 = vunpack.c.l.b16 %v39
    %v68 = vunpack.c.l.b16 %v40
    %v69 = vunpack.c.l.b16 %v41
    %v70 = vpack.c.b16 %v68, %v67
    %v71 = vpack.c.b16 %v69, %v69
    %vm72 = vcmask 31744
    %v74 = vsel %vm72, %v70, 0
    %v77 = vsel %vm72, %v71, 0
    %vm79 = vcmask 1041408
    %v81 = vsel %vm79, %v42, 0
    %v84 = vsel %vm79, %v43, 0
    %v87 = vsel %vm79, %v44, 0
    %v90 = vsel %vm79, %v45, 0
    %92 = vmatprep.subr.bf16.mxu0 %v84
    %93 = vmatpush1.bf16.msra.mxu0 %v81
    %94 = vmatprep.subr.bf16.mxu0 0
    %95 = vmatpush1.bf16.msra.mxu0 0
    %96 = vmatprep.subr.bf16.mxu0 0
    %97 = vmatpush1.bf16.msra.mxu0 0
    %98 = vmatprep.subr.bf16.mxu0 0
    %99 = vmatpush1.bf16.msra.mxu0 0
    %100 = vmatprep.subr.bf16.mxu0 0
    %101 = vmatpush1.bf16.msra.mxu0 0
    %102 = vmatprep.subr.bf16.mxu0 0
    %103 = vmatpush1.bf16.msra.mxu0 0
    %104 = vmatprep.subr.bf16.mxu0 0
    %105 = vmatpush1.bf16.msra.mxu0 0
    %106 = vmatprep.subr.bf16.mxu0 0
    %107 = vmatpush1.bf16.msra.mxu0 0
    %108 = vmatprep.subr.bf16.mxu0 0
    %109 = vmatpush1.bf16.msra.mxu0 0
    %110 = vmatprep.subr.bf16.mxu0 0
    %111 = vmatpush1.bf16.msra.mxu0 0
    %112 = vmatprep.subr.bf16.mxu0 0
    %113 = vmatpush1.bf16.msra.mxu0 0
    %114 = vmatprep.subr.bf16.mxu0 0
    %115 = vmatpush1.bf16.msra.mxu0 0
    %116 = vmatprep.subr.bf16.mxu0 0
    %117 = vmatpush1.bf16.msra.mxu0 0
    %118 = vmatprep.subr.bf16.mxu0 0
    %119 = vmatpush1.bf16.msra.mxu0 0
    %120 = vmatprep.subr.bf16.mxu0 0
    %121 = vmatpush1.bf16.msra.mxu0 0
    %122 = vmatprep.subr.bf16.mxu0 0
    %123 = vmatpush1.bf16.msra.mxu0 0
    %124 = vmatprep.mubr.bf16.mxu0 0
    %125 = vmatmul.mubr.bf16.gmra.mrb[0].mxu0 %v74
    %v126 = vpop.f32.mrb[0].mxu0
    %v127 = vadd.f32 %v52, %v126
    %v128 = vpop.f32.mrb[0].mxu0
    %v129 = vadd.f32 %v52, %v128
    %v130 = vpop.f32.mrb[0].mxu0
    %v131 = vadd.f32 %v57, %v130
    %v132 = vpop.f32.mrb[0].mxu0
    %v133 = vadd.f32 %v57, %v132
    %134 = vmatprep.mubr.bf16.mxu0 0
    %135 = vmatmul.mubr.bf16.gmra.mrb[0].mxu0 %v77
    %v136 = vpop.f32.mrb[0].mxu0
    %v137 = vadd.f32 %v62, %v136
    %v138 = vpop.f32.mrb[0].mxu0
    %v139 = vadd.f32 %v62, %v138
    %v140 = vpop.f32.mrb[0].mxu0
    %v141 = vpop.f32.mrb[0].mxu0
    %142 = vdwg.mxu0
    %143 = vmatprep.subr.bf16.mxu0 %v90
    %144 = vmatpush1.bf16.msra.mxu0 %v87
    %145 = vmatprep.subr.bf16.mxu0 0
    %146 = vmatpush1.bf16.msra.mxu0 0
    %147 = vmatprep.subr.bf16.mxu0 0
    %148 = vmatpush1.bf16.msra.mxu0 0
    %149 = vmatprep.subr.bf16.mxu0 0
    %150 = vmatpush1.bf16.msra.mxu0 0
    %151 = vmatprep.subr.bf16.mxu0 0
    %152 = vmatpush1.bf16.msra.mxu0 0
    %153 = vmatprep.subr.bf16.mxu0 0
    %154 = vmatpush1.bf16.msra.mxu0 0
    %155 = vmatprep.subr.bf16.mxu0 0
    %156 = vmatpush1.bf16.msra.mxu0 0
    %157 = vmatprep.subr.bf16.mxu0 0
    %158 = vmatpush1.bf16.msra.mxu0 0
    %159 = vmatprep.subr.bf16.mxu0 0
    %160 = vmatpush1.bf16.msra.mxu0 0
    %161 = vmatprep.subr.bf16.mxu0 0
    %162 = vmatpush1.bf16.msra.mxu0 0
    %163 = vmatprep.subr.bf16.mxu0 0
    %164 = vmatpush1.bf16.msra.mxu0 0
    %165 = vmatprep.subr.bf16.mxu0 0
    %166 = vmatpush1.bf16.msra.mxu0 0
    %167 = vmatprep.subr.bf16.mxu0 0
    %168 = vmatpush1.bf16.msra.mxu0 0
    %169 = vmatprep.subr.bf16.mxu0 0
    %170 = vmatpush1.bf16.msra.mxu0 0
    %171 = vmatprep.subr.bf16.mxu0 0
    %172 = vmatpush1.bf16.msra.mxu0 0
    %173 = vmatprep.subr.bf16.mxu0 0
    %174 = vmatpush1.bf16.msra.mxu0 0
    %175 = vmatprep.mubr.bf16.mxu0 0
    %176 = vmatmul.mubr.bf16.gmra.mrb[0].mxu0 %v74
    %v177 = vpop.f32.mrb[0].mxu0
    %v178 = vadd.f32 %v52, %v177
    %v179 = vpop.f32.mrb[0].mxu0
    %v180 = vadd.f32 %v52, %v179
    %v181 = vpop.f32.mrb[0].mxu0
    %v182 = vadd.f32 %v57, %v181
    %v183 = vpop.f32.mrb[0].mxu0
    %v184 = vadd.f32 %v57, %v183
    %185 = vmatprep.mubr.bf16.mxu0 0
    %186 = vmatmul.mubr.bf16.gmra.mrb[0].mxu0 %v77
    %v187 = vpop.f32.mrb[0].mxu0
    %v188 = vadd.f32 %v62, %v187
    %v189 = vpop.f32.mrb[0].mxu0
    %v190 = vadd.f32 %v62, %v189
    %v191 = vpop.f32.mrb[0].mxu0
    %v192 = vpop.f32.mrb[0].mxu0
    %193 = vdwg.mxu0
    %v194 = vmax.f32 %v127, 0.0
    %v195 = vmax.f32 %v129, 0.0
    %v196 = vmax.f32 %v178, 0.0
    %v197 = vmax.f32 %v180, 0.0
    %v198 = vmax.f32 %v131, 0.0
    %v199 = vmax.f32 %v133, 0.0
    %v200 = vmax.f32 %v182, 0.0
    %v201 = vmax.f32 %v184, 0.0
    %v202 = vmax.f32 %v137, 0.0
    %v203 = vmax.f32 %v139, 0.0
    %v204 = vmax.f32 %v188, 0.0
    %v205 = vmax.f32 %v190, 0.0
    %vm206 = vcmp.ge.s32.totalorder %v29, 1
    %207 = vrot.lane.b32.xlu0 %v30, 1
    %v208 = vpop.permute.xlu0 %207
    %209 = vrot.lane.b32.xlu0 %v34, 1
    %v210 = vpop.permute.xlu0 %209
    %211 = vrot.lane.b32.xlu0 %v32, 1
    %v212 = vpop.permute.xlu0 %211
    %213 = vrot.lane.b32.xlu0 %v37, 1
    %v214 = vpop.permute.xlu0 %213
    %v215 = vlaneseq
    %v216 = vand.u32 %v215, 127
    %vm217 = vcmp.lt.s32.totalorder %v216, 1
    %v218 = vsel %vm217, %v212, %v214
    %v219 = vsel %vm217, %v210, %v212
    %v220 = vsel %vm217, %v208, %v210
    %v221 = vsel %vm217, %v214, %v208
    %v222 = vsel %vm206, 1, 0
    %v223 = vlaneseq
    %v224 = vshrl.u32 %v223, 7
    %v225 = vsub.s32 0, %v224
    %v226 = vrot.slane %v222, %v225
    %v227 = vlaneseq
    %v228 = vshrl.u32 %v227, 7
    %v229 = vsub.s32 1, %v228
    %v230 = vrot.slane %v222, %v229
    %v231 = vlaneseq
    %v232 = vshrl.u32 %v231, 7
    %v233 = vsub.s32 2, %v232
    %v234 = vrot.slane %v222, %v233
    %v235 = vlaneseq
    %v236 = vshrl.u32 %v235, 7
    %v237 = vsub.s32 3, %v236
    %v238 = vrot.slane %v222, %v237
    %vm239 = vcmp.eq.s32.totalorder %v226, 1
    %vm240 = vcmp.eq.s32.totalorder %v230, 1
    %vm241 = vcmp.eq.s32.totalorder %v234, 1
    %vm242 = vcmp.eq.s32.totalorder %v238, 1
    %v243 = vsel %vm239, %v221, -3.4028235e+38
    %v244 = vsel %vm240, %v220, -3.4028235e+38
    %v245 = vsel %vm241, %v219, -3.4028235e+38
    %v246 = vsel %vm242, %v218, -3.4028235e+38
    %vm247 = vcmp.le.s32.totalorder %v29, 14
    %248 = vrot.lane.b32.xlu0 %v30, 127
    %v249 = vpop.permute.xlu0 %248
    %250 = vrot.lane.b32.xlu0 %v34, 127
    %v251 = vpop.permute.xlu0 %250
    %252 = vrot.lane.b32.xlu0 %v32, 127
    %v253 = vpop.permute.xlu0 %252
    %254 = vrot.lane.b32.xlu0 %v37, 127
    %v255 = vpop.permute.xlu0 %254
    %vm256 = vcmp.lt.s32.totalorder %v216, 127
    %v257 = vsel %vm256, %v253, %v255
    %v258 = vsel %vm256, %v251, %v253
    %v259 = vsel %vm256, %v249, %v251
    %v260 = vsel %vm256, %v255, %v249
    %v261 = vsel %vm247, 1, 0
    %v262 = vlaneseq
    %v263 = vshrl.u32 %v262, 7
    %v264 = vsub.s32 0, %v263
    %v265 = vrot.slane %v261, %v264
    %v266 = vlaneseq
    %v267 = vshrl.u32 %v266, 7
    %v268 = vsub.s32 1, %v267
    %v269 = vrot.slane %v261, %v268
    %v270 = vlaneseq
    %v271 = vshrl.u32 %v270, 7
    %v272 = vsub.s32 2, %v271
    %v273 = vrot.slane %v261, %v272
    %v274 = vlaneseq
    %v275 = vshrl.u32 %v274, 7
    %v276 = vsub.s32 3, %v275
    %v277 = vrot.slane %v261, %v276
    %vm278 = vcmp.eq.s32.totalorder %v265, 1
    %vm279 = vcmp.eq.s32.totalorder %v269, 1
    %vm280 = vcmp.eq.s32.totalorder %v273, 1
    %vm281 = vcmp.eq.s32.totalorder %v277, 1
    %v282 = vsel %vm278, %v259, -3.4028235e+38
    %v283 = vsel %vm279, %v258, -3.4028235e+38
    %v284 = vsel %vm280, %v257, -3.4028235e+38
    %v285 = vsel %vm281, %v260, -3.4028235e+38
    %v286 = vmax.f32 %v243, %v282
    %v287 = vmax.f32 %v244, %v283
    %v288 = vmax.f32 %v245, %v284
    %v289 = vmax.f32 %v246, %v285
    %v290 = vmax.f32 %v30, %v286
    %v291 = vmax.f32 %v34, %v287
    %v292 = vmax.f32 %v32, %v288
    %v293 = vmax.f32 %v37, %v289
    %vm294 = vcmp.ge.s32.totalorder %v28, 1
    %295 = vrot.lane.b32.xlu0 %v290, 16
    %v296 = vpop.permute.xlu0 %295
    %297 = vrot.lane.b32.xlu0 %v291, 16
    %v298 = vpop.permute.xlu0 %297
    %299 = vrot.lane.b32.xlu0 %v292, 16
    %v300 = vpop.permute.xlu0 %299
    %301 = vrot.lane.b32.xlu0 %v293, 16
    %v302 = vpop.permute.xlu0 %301
    %vm303 = vcmp.lt.s32.totalorder %v216, 16
    %v304 = vsel %vm303, %v300, %v302
    %v305 = vsel %vm303, %v298, %v300
    %v306 = vsel %vm303, %v296, %v298
    %v307 = vsel %vm303, %v302, %v296
    %v308 = vsel %vm294, 1, 0
    %v309 = vlaneseq
    %v310 = vshrl.u32 %v309, 7
    %v311 = vsub.s32 0, %v310
    %v312 = vrot.slane %v308, %v311
    %v313 = vlaneseq
    %v314 = vshrl.u32 %v313, 7
    %v315 = vsub.s32 1, %v314
    %v316 = vrot.slane %v308, %v315
    %v317 = vlaneseq
    %v318 = vshrl.u32 %v317, 7
    %v319 = vsub.s32 2, %v318
    %v320 = vrot.slane %v308, %v319
    %v321 = vlaneseq
    %v322 = vshrl.u32 %v321, 7
    %v323 = vsub.s32 3, %v322
    %v324 = vrot.slane %v308, %v323
    %vm325 = vcmp.eq.s32.totalorder %v312, 1
    %vm326 = vcmp.eq.s32.totalorder %v316, 1
    %vm327 = vcmp.eq.s32.totalorder %v320, 1
    %vm328 = vcmp.eq.s32.totalorder %v324, 1
    %v329 = vsel %vm325, %v307, -3.4028235e+38
    %v330 = vsel %vm326, %v306, -3.4028235e+38
    %v331 = vsel %vm327, %v305, -3.4028235e+38
    %v332 = vsel %vm328, %v304, -3.4028235e+38
    %vm333 = vcmp.le.s32.totalorder %v28, 14
    %334 = vrot.lane.b32.xlu0 %v290, 112
    %v335 = vpop.permute.xlu0 %334
    %336 = vrot.lane.b32.xlu0 %v291, 112
    %v337 = vpop.permute.xlu0 %336
    %338 = vrot.lane.b32.xlu0 %v292, 112
    %v339 = vpop.permute.xlu0 %338
    %340 = vrot.lane.b32.xlu0 %v293, 112
    %v341 = vpop.permute.xlu0 %340
    %vm342 = vcmp.lt.s32.totalorder %v216, 112
    %v343 = vsel %vm342, %v339, %v341
    %v344 = vsel %vm342, %v337, %v339
    %v345 = vsel %vm342, %v335, %v337
    %v346 = vsel %vm342, %v341, %v335
    %v347 = vsel %vm333, 1, 0
    %v348 = vlaneseq
    %v349 = vshrl.u32 %v348, 7
    %v350 = vsub.s32 0, %v349
    %v351 = vrot.slane %v347, %v350
    %v352 = vlaneseq
    %v353 = vshrl.u32 %v352, 7
    %v354 = vsub.s32 1, %v353
    %v355 = vrot.slane %v347, %v354
    %v356 = vlaneseq
    %v357 = vshrl.u32 %v356, 7
    %v358 = vsub.s32 2, %v357
    %v359 = vrot.slane %v347, %v358
    %v360 = vlaneseq
    %v361 = vshrl.u32 %v360, 7
    %v362 = vsub.s32 3, %v361
    %v363 = vrot.slane %v347, %v362
    %vm364 = vcmp.eq.s32.totalorder %v351, 1
    %vm365 = vcmp.eq.s32.totalorder %v355, 1
    %vm366 = vcmp.eq.s32.totalorder %v359, 1
    %vm367 = vcmp.eq.s32.totalorder %v363, 1
    %v368 = vsel %vm364, %v345, -3.4028235e+38
    %v369 = vsel %vm365, %v344, -3.4028235e+38
    %v370 = vsel %vm366, %v343, -3.4028235e+38
    %v371 = vsel %vm367, %v346, -3.4028235e+38
    %v372 = vmax.f32 %v329, %v368
    %v373 = vmax.f32 %v330, %v369
    %v374 = vmax.f32 %v331, %v370
    %v375 = vmax.f32 %v332, %v371
    %v376 = vmax.f32 %v290, %v372
    %v377 = vmax.f32 %v291, %v373
    %v378 = vmax.f32 %v292, %v374
    %v379 = vmax.f32 %v293, %v375
    %380 = vrot.lane.b32.xlu0 %v198, 17
    %v381 = vpop.permute.xlu0 %380
    %382 = vrot.lane.b32.xlu0 %v202, 17
    %v383 = vpop.permute.xlu0 %382
    %384 = vrot.lane.b32.xlu0 %v199, 17
    %v385 = vpop.permute.xlu0 %384
    %386 = vrot.lane.b32.xlu0 %v203, 17
    %v387 = vpop.permute.xlu0 %386
    %388 = vrot.lane.b32.xlu0 %v200, 17
    %v389 = vpop.permute.xlu0 %388
    %390 = vrot.lane.b32.xlu0 %v204, 17
    %v391 = vpop.permute.xlu0 %390
    %392 = vrot.lane.b32.xlu0 %v201, 17
    %v393 = vpop.permute.xlu0 %392
    %394 = vrot.lane.b32.xlu0 %v205, 17
    %v395 = vpop.permute.xlu0 %394
    %vm396 = vcmp.lt.s32.totalorder %v216, 17
    %v397 = vsel %vm396, %v389, %v393
    %v398 = vsel %vm396, %v391, %v395
    %v399 = vsel %vm396, %v385, %v389
    %v400 = vsel %vm396, %v387, %v391
    %v401 = vsel %vm396, %v381, %v385
    %v402 = vsel %vm396, %v383, %v387
    %v403 = vsel %vm396, %v393, %v381
    %v404 = vsel %vm396, %v395, %v383
    %vm405 = vmand %vm294, %vm206
    %v406 = vsel %vm405, 1, 0
    %v407 = vlaneseq
    %v408 = vshrl.u32 %v407, 7
    %v409 = vsub.s32 0, %v408
    %v410 = vrot.slane %v406, %v409
    %v411 = vlaneseq
    %v412 = vshrl.u32 %v411, 7
    %v413 = vsub.s32 1, %v412
    %v414 = vrot.slane %v406, %v413
    %v415 = vlaneseq
    %v416 = vshrl.u32 %v415, 7
    %v417 = vsub.s32 2, %v416
    %v418 = vrot.slane %v406, %v417
    %v419 = vlaneseq
    %v420 = vshrl.u32 %v419, 7
    %v421 = vsub.s32 3, %v420
    %v422 = vrot.slane %v406, %v421
    %vm423 = vcmp.eq.s32.totalorder %v410, 1
    %vm424 = vcmp.eq.s32.totalorder %v414, 1
    %vm425 = vcmp.eq.s32.totalorder %v418, 1
    %vm426 = vcmp.eq.s32.totalorder %v422, 1
    %v427 = vsel %vm423, %v403, 0.0
    %v428 = vsel %vm424, %v401, 0.0
    %v429 = vsel %vm425, %v399, 0.0
    %v430 = vsel %vm426, %v397, 0.0
    %v431 = vsel %vm423, %v404, 0.0
    %v432 = vsel %vm424, %v402, 0.0
    %v433 = vsel %vm425, %v400, 0.0
    %v434 = vsel %vm426, %v398, 0.0
    %435 = vrot.lane.b32.xlu0 %v198, 16
    %v436 = vpop.permute.xlu0 %435
    %437 = vrot.lane.b32.xlu0 %v202, 16
    %v438 = vpop.permute.xlu0 %437
    %439 = vrot.lane.b32.xlu0 %v199, 16
    %v440 = vpop.permute.xlu0 %439
    %441 = vrot.lane.b32.xlu0 %v203, 16
    %v442 = vpop.permute.xlu0 %441
    %443 = vrot.lane.b32.xlu0 %v200, 16
    %v444 = vpop.permute.xlu0 %443
    %445 = vrot.lane.b32.xlu0 %v204, 16
    %v446 = vpop.permute.xlu0 %445
    %447 = vrot.lane.b32.xlu0 %v201, 16
    %v448 = vpop.permute.xlu0 %447
    %449 = vrot.lane.b32.xlu0 %v205, 16
    %v450 = vpop.permute.xlu0 %449
    %v451 = vsel %vm303, %v444, %v448
    %v452 = vsel %vm303, %v446, %v450
    %v453 = vsel %vm303, %v440, %v444
    %v454 = vsel %vm303, %v442, %v446
    %v455 = vsel %vm303, %v436, %v440
    %v456 = vsel %vm303, %v438, %v442
    %v457 = vsel %vm303, %v448, %v436
    %v458 = vsel %vm303, %v450, %v438
    %v459 = vsel %vm325, %v457, 0.0
    %v460 = vsel %vm326, %v455, 0.0
    %v461 = vsel %vm327, %v453, 0.0
    %v462 = vsel %vm328, %v451, 0.0
    %v463 = vsel %vm325, %v458, 0.0
    %v464 = vsel %vm326, %v456, 0.0
    %v465 = vsel %vm327, %v454, 0.0
    %v466 = vsel %vm328, %v452, 0.0
    %467 = vrot.lane.b32.xlu0 %v198, 15
    %v468 = vpop.permute.xlu0 %467
    %469 = vrot.lane.b32.xlu0 %v202, 15
    %v470 = vpop.permute.xlu0 %469
    %471 = vrot.lane.b32.xlu0 %v199, 15
    %v472 = vpop.permute.xlu0 %471
    %473 = vrot.lane.b32.xlu0 %v203, 15
    %v474 = vpop.permute.xlu0 %473
    %475 = vrot.lane.b32.xlu0 %v200, 15
    %v476 = vpop.permute.xlu0 %475
    %477 = vrot.lane.b32.xlu0 %v204, 15
    %v478 = vpop.permute.xlu0 %477
    %479 = vrot.lane.b32.xlu0 %v201, 15
    %v480 = vpop.permute.xlu0 %479
    %481 = vrot.lane.b32.xlu0 %v205, 15
    %v482 = vpop.permute.xlu0 %481
    %vm483 = vcmp.lt.s32.totalorder %v216, 15
    %v484 = vsel %vm483, %v476, %v480
    %v485 = vsel %vm483, %v478, %v482
    %v486 = vsel %vm483, %v472, %v476
    %v487 = vsel %vm483, %v474, %v478
    %v488 = vsel %vm483, %v468, %v472
    %v489 = vsel %vm483, %v470, %v474
    %v490 = vsel %vm483, %v480, %v468
    %v491 = vsel %vm483, %v482, %v470
    %vm492 = vmand %vm294, %vm247
    %v493 = vsel %vm492, 1, 0
    %v494 = vlaneseq
    %v495 = vshrl.u32 %v494, 7
    %v496 = vsub.s32 0, %v495
    %v497 = vrot.slane %v493, %v496
    %v498 = vlaneseq
    %v499 = vshrl.u32 %v498, 7
    %v500 = vsub.s32 1, %v499
    %v501 = vrot.slane %v493, %v500
    %v502 = vlaneseq
    %v503 = vshrl.u32 %v502, 7
    %v504 = vsub.s32 2, %v503
    %v505 = vrot.slane %v493, %v504
    %v506 = vlaneseq
    %v507 = vshrl.u32 %v506, 7
    %v508 = vsub.s32 3, %v507
    %v509 = vrot.slane %v493, %v508
    %vm510 = vcmp.eq.s32.totalorder %v497, 1
    %vm511 = vcmp.eq.s32.totalorder %v501, 1
    %vm512 = vcmp.eq.s32.totalorder %v505, 1
    %vm513 = vcmp.eq.s32.totalorder %v509, 1
    %v514 = vsel %vm510, %v490, 0.0
    %v515 = vsel %vm511, %v488, 0.0
    %v516 = vsel %vm512, %v486, 0.0
    %v517 = vsel %vm513, %v484, 0.0
    %v518 = vsel %vm510, %v491, 0.0
    %v519 = vsel %vm511, %v489, 0.0
    %v520 = vsel %vm512, %v487, 0.0
    %v521 = vsel %vm513, %v485, 0.0
    %522 = vrot.lane.b32.xlu0 %v198, 1
    %v523 = vpop.permute.xlu0 %522
    %524 = vrot.lane.b32.xlu0 %v202, 1
    %v525 = vpop.permute.xlu0 %524
    %526 = vrot.lane.b32.xlu0 %v199, 1
    %v527 = vpop.permute.xlu0 %526
    %528 = vrot.lane.b32.xlu0 %v203, 1
    %v529 = vpop.permute.xlu0 %528
    %530 = vrot.lane.b32.xlu0 %v200, 1
    %v531 = vpop.permute.xlu0 %530
    %532 = vrot.lane.b32.xlu0 %v204, 1
    %v533 = vpop.permute.xlu0 %532
    %534 = vrot.lane.b32.xlu0 %v201, 1
    %v535 = vpop.permute.xlu0 %534
    %536 = vrot.lane.b32.xlu0 %v205, 1
    %v537 = vpop.permute.xlu0 %536
    %v538 = vsel %vm217, %v531, %v535
    %v539 = vsel %vm217, %v533, %v537
    %v540 = vsel %vm217, %v527, %v531
    %v541 = vsel %vm217, %v529, %v533
    %v542 = vsel %vm217, %v523, %v527
    %v543 = vsel %vm217, %v525, %v529
    %v544 = vsel %vm217, %v535, %v523
    %v545 = vsel %vm217, %v537, %v525
    %v546 = vsel %vm239, %v544, 0.0
    %v547 = vsel %vm240, %v542, 0.0
    %v548 = vsel %vm241, %v540, 0.0
    %v549 = vsel %vm242, %v538, 0.0
    %v550 = vsel %vm239, %v545, 0.0
    %v551 = vsel %vm240, %v543, 0.0
    %v552 = vsel %vm241, %v541, 0.0
    %v553 = vsel %vm242, %v539, 0.0
    %554 = vrot.lane.b32.xlu0 %v198, 127
    %v555 = vpop.permute.xlu0 %554
    %556 = vrot.lane.b32.xlu0 %v202, 127
    %v557 = vpop.permute.xlu0 %556
    %558 = vrot.lane.b32.xlu0 %v199, 127
    %v559 = vpop.permute.xlu0 %558
    %560 = vrot.lane.b32.xlu0 %v203, 127
    %v561 = vpop.permute.xlu0 %560
    %562 = vrot.lane.b32.xlu0 %v200, 127
    %v563 = vpop.permute.xlu0 %562
    %564 = vrot.lane.b32.xlu0 %v204, 127
    %v565 = vpop.permute.xlu0 %564
    %566 = vrot.lane.b32.xlu0 %v201, 127
    %v567 = vpop.permute.xlu0 %566
    %568 = vrot.lane.b32.xlu0 %v205, 127
    %v569 = vpop.permute.xlu0 %568
    %v570 = vsel %vm256, %v563, %v567
    %v571 = vsel %vm256, %v565, %v569
    %v572 = vsel %vm256, %v559, %v563
    %v573 = vsel %vm256, %v561, %v565
    %v574 = vsel %vm256, %v555, %v559
    %v575 = vsel %vm256, %v557, %v561
    %v576 = vsel %vm256, %v567, %v555
    %v577 = vsel %vm256, %v569, %v557
    %v578 = vsel %vm278, %v574, 0.0
    %v579 = vsel %vm279, %v572, 0.0
    %v580 = vsel %vm280, %v570, 0.0
    %v581 = vsel %vm281, %v576, 0.0
    %v582 = vsel %vm278, %v575, 0.0
    %v583 = vsel %vm279, %v573, 0.0
    %v584 = vsel %vm280, %v571, 0.0
    %v585 = vsel %vm281, %v577, 0.0
    %586 = vrot.lane.b32.xlu0 %v198, 113
    %v587 = vpop.permute.xlu0 %586
    %588 = vrot.lane.b32.xlu0 %v202, 113
    %v589 = vpop.permute.xlu0 %588
    %590 = vrot.lane.b32.xlu0 %v199, 113
    %v591 = vpop.permute.xlu0 %590
    %592 = vrot.lane.b32.xlu0 %v203, 113
    %v593 = vpop.permute.xlu0 %592
    %594 = vrot.lane.b32.xlu0 %v200, 113
    %v595 = vpop.permute.xlu0 %594
    %596 = vrot.lane.b32.xlu0 %v204, 113
    %v597 = vpop.permute.xlu0 %596
    %598 = vrot.lane.b32.xlu0 %v201, 113
    %v599 = vpop.permute.xlu0 %598
    %600 = vrot.lane.b32.xlu0 %v205, 113
    %v601 = vpop.permute.xlu0 %600
    %vm602 = vcmp.lt.s32.totalorder %v216, 113
    %v603 = vsel %vm602, %v595, %v599
    %v604 = vsel %vm602, %v597, %v601
    %v605 = vsel %vm602, %v591, %v595
    %v606 = vsel %vm602, %v593, %v597
    %v607 = vsel %vm602, %v587, %v591
    %v608 = vsel %vm602, %v589, %v593
    %v609 = vsel %vm602, %v599, %v587
    %v610 = vsel %vm602, %v601, %v589
    %vm611 = vmand %vm333, %vm206
    %v612 = vsel %vm611, 1, 0
    %v613 = vlaneseq
    %v614 = vshrl.u32 %v613, 7
    %v615 = vsub.s32 0, %v614
    %v616 = vrot.slane %v612, %v615
    %v617 = vlaneseq
    %v618 = vshrl.u32 %v617, 7
    %v619 = vsub.s32 1, %v618
    %v620 = vrot.slane %v612, %v619
    %v621 = vlaneseq
    %v622 = vshrl.u32 %v621, 7
    %v623 = vsub.s32 2, %v622
    %v624 = vrot.slane %v612, %v623
    %v625 = vlaneseq
    %v626 = vshrl.u32 %v625, 7
    %v627 = vsub.s32 3, %v626
    %v628 = vrot.slane %v612, %v627
    %vm629 = vcmp.eq.s32.totalorder %v616, 1
    %vm630 = vcmp.eq.s32.totalorder %v620, 1
    %vm631 = vcmp.eq.s32.totalorder %v624, 1
    %vm632 = vcmp.eq.s32.totalorder %v628, 1
    %v633 = vsel %vm629, %v607, 0.0
    %v634 = vsel %vm630, %v605, 0.0
    %v635 = vsel %vm631, %v603, 0.0
    %v636 = vsel %vm632, %v609, 0.0
    %v637 = vsel %vm629, %v608, 0.0
    %v638 = vsel %vm630, %v606, 0.0
    %v639 = vsel %vm631, %v604, 0.0
    %v640 = vsel %vm632, %v610, 0.0
    %641 = vrot.lane.b32.xlu0 %v198, 112
    %v642 = vpop.permute.xlu0 %641
    %643 = vrot.lane.b32.xlu0 %v202, 112
    %v644 = vpop.permute.xlu0 %643
    %645 = vrot.lane.b32.xlu0 %v199, 112
    %v646 = vpop.permute.xlu0 %645
    %647 = vrot.lane.b32.xlu0 %v203, 112
    %v648 = vpop.permute.xlu0 %647
    %649 = vrot.lane.b32.xlu0 %v200, 112
    %v650 = vpop.permute.xlu0 %649
    %651 = vrot.lane.b32.xlu0 %v204, 112
    %v652 = vpop.permute.xlu0 %651
    %653 = vrot.lane.b32.xlu0 %v201, 112
    %v654 = vpop.permute.xlu0 %653
    %655 = vrot.lane.b32.xlu0 %v205, 112
    %v656 = vpop.permute.xlu0 %655
    %v657 = vsel %vm342, %v650, %v654
    %v658 = vsel %vm342, %v652, %v656
    %v659 = vsel %vm342, %v646, %v650
    %v660 = vsel %vm342, %v648, %v652
    %v661 = vsel %vm342, %v642, %v646
    %v662 = vsel %vm342, %v644, %v648
    %v663 = vsel %vm342, %v654, %v642
    %v664 = vsel %vm342, %v656, %v644
    %v665 = vsel %vm364, %v661, 0.0
    %v666 = vsel %vm365, %v659, 0.0
    %v667 = vsel %vm366, %v657, 0.0
    %v668 = vsel %vm367, %v663, 0.0
    %v669 = vsel %vm364, %v662, 0.0
    %v670 = vsel %vm365, %v660, 0.0
    %v671 = vsel %vm366, %v658, 0.0
    %v672 = vsel %vm367, %v664, 0.0
    %673 = vrot.lane.b32.xlu0 %v198, 111
    %v674 = vpop.permute.xlu0 %673
    %675 = vrot.lane.b32.xlu0 %v202, 111
    %v676 = vpop.permute.xlu0 %675
    %677 = vrot.lane.b32.xlu0 %v199, 111
    %v678 = vpop.permute.xlu0 %677
    %679 = vrot.lane.b32.xlu0 %v203, 111
    %v680 = vpop.permute.xlu0 %679
    %681 = vrot.lane.b32.xlu0 %v200, 111
    %v682 = vpop.permute.xlu0 %681
    %683 = vrot.lane.b32.xlu0 %v204, 111
    %v684 = vpop.permute.xlu0 %683
    %685 = vrot.lane.b32.xlu0 %v201, 111
    %v686 = vpop.permute.xlu0 %685
    %687 = vrot.lane.b32.xlu0 %v205, 111
    %v688 = vpop.permute.xlu0 %687
    %vm689 = vcmp.lt.s32.totalorder %v216, 111
    %v690 = vsel %vm689, %v682, %v686
    %v691 = vsel %vm689, %v684, %v688
    %v692 = vsel %vm689, %v678, %v682
    %v693 = vsel %vm689, %v680, %v684
    %v694 = vsel %vm689, %v674, %v678
    %v695 = vsel %vm689, %v676, %v680
    %v696 = vsel %vm689, %v686, %v674
    %v697 = vsel %vm689, %v688, %v676
    %vm698 = vmand %vm333, %vm247
    %v699 = vsel %vm698, 1, 0
    %v700 = vlaneseq
    %v701 = vshrl.u32 %v700, 7
    %v702 = vsub.s32 0, %v701
    %v703 = vrot.slane %v699, %v702
    %v704 = vlaneseq
    %v705 = vshrl.u32 %v704, 7
    %v706 = vsub.s32 1, %v705
    %v707 = vrot.slane %v699, %v706
    %v708 = vlaneseq
    %v709 = vshrl.u32 %v708, 7
    %v710 = vsub.s32 2, %v709
    %v711 = vrot.slane %v699, %v710
    %v712 = vlaneseq
    %v713 = vshrl.u32 %v712, 7
    %v714 = vsub.s32 3, %v713
    %v715 = vrot.slane %v699, %v714
    %vm716 = vcmp.eq.s32.totalorder %v703, 1
    %vm717 = vcmp.eq.s32.totalorder %v707, 1
    %vm718 = vcmp.eq.s32.totalorder %v711, 1
    %vm719 = vcmp.eq.s32.totalorder %v715, 1
    %v720 = vsel %vm716, %v694, 0.0
    %v721 = vsel %vm717, %v692, 0.0
    %v722 = vsel %vm718, %v690, 0.0
    %v723 = vsel %vm719, %v696, 0.0
    %v724 = vsel %vm716, %v695, 0.0
    %v725 = vsel %vm717, %v693, 0.0
    %v726 = vsel %vm718, %v691, 0.0
    %v727 = vsel %vm719, %v697, 0.0
    %v736 = vrot.slane %v459, 6
    %v737 = vrot.slane %v460, 6
    %v738 = vrot.slane %v461, 6
    %v739 = vrot.slane %v462, 6
    %v740 = vrot.slane %v463, 6
    %v741 = vsel %vm79, %v736, %v740
    %v742 = vrot.slane %v464, 6
    %v743 = vsel %vm79, %v737, %v742
    %v744 = vrot.slane %v465, 6
    %v745 = vsel %vm79, %v738, %v744
    %v746 = vrot.slane %v466, 6
    %v747 = vsel %vm79, %v739, %v746
    %vm764 = vcmask 1043456
    %v765 = vrot.slane %v514, 4
    %v766 = vrot.slane %v515, 4
    %v767 = vrot.slane %v516, 4
    %v768 = vrot.slane %v517, 4
    %v769 = vrot.slane %v518, 4
    %v770 = vsel %vm764, %v765, %v769
    %v771 = vrot.slane %v519, 4
    %v772 = vsel %vm764, %v766, %v771
    %v773 = vrot.slane %v520, 4
    %v774 = vsel %vm764, %v767, %v773
    %v775 = vrot.slane %v521, 4
    %v776 = vsel %vm764, %v768, %v775
    %vm793 = vcmask 1045504
    %v794 = vrot.slane %v546, 2
    %v795 = vrot.slane %v547, 2
    %v796 = vrot.slane %v548, 2
    %v797 = vrot.slane %v549, 2
    %v798 = vrot.slane %v550, 2
    %v799 = vsel %vm793, %v794, %v798
    %v800 = vrot.slane %v551, 2
    %v801 = vsel %vm793, %v795, %v800
    %v802 = vrot.slane %v552, 2
    %v803 = vsel %vm793, %v796, %v802
    %v804 = vrot.slane %v553, 2
    %v805 = vsel %vm793, %v797, %v804
    %v822 = vrot.slane %v578, 6
    %v823 = vrot.slane %v579, 6
    %v824 = vrot.slane %v580, 6
    %v825 = vrot.slane %v581, 6
    %v826 = vrot.slane %v582, 6
    %v827 = vsel %vm79, %v822, %v826
    %v828 = vrot.slane %v583, 6
    %v829 = vsel %vm79, %v823, %v828
    %v830 = vrot.slane %v584, 6
    %v831 = vsel %vm79, %v824, %v830
    %v832 = vrot.slane %v585, 6
    %v833 = vsel %vm79, %v825, %v832
    %v850 = vrot.slane %v633, 4
    %v851 = vrot.slane %v634, 4
    %v852 = vrot.slane %v635, 4
    %v853 = vrot.slane %v636, 4
    %v854 = vrot.slane %v637, 4
    %v855 = vsel %vm764, %v850, %v854
    %v856 = vrot.slane %v638, 4
    %v857 = vsel %vm764, %v851, %v856
    %v858 = vrot.slane %v639, 4
    %v859 = vsel %vm764, %v852, %v858
    %v860 = vrot.slane %v640, 4
    %v861 = vsel %vm764, %v853, %v860
    %v878 = vrot.slane %v665, 2
    %v879 = vrot.slane %v666, 2
    %v880 = vrot.slane %v667, 2
    %v881 = vrot.slane %v668, 2
    %v882 = vrot.slane %v669, 2
    %v883 = vsel %vm793, %v878, %v882
    %v884 = vrot.slane %v670, 2
    %v885 = vsel %vm793, %v879, %v884
    %v886 = vrot.slane %v671, 2
    %v887 = vsel %vm793, %v880, %v886
    %v888 = vrot.slane %v672, 2
    %v889 = vsel %vm793, %v881, %v888
    %v902 = vrot.slane %v376, 6
    %v903 = vrot.slane %v377, 6
    %v904 = vrot.slane %v378, 6
    %v905 = vrot.slane %v379, 6
    %v910 = vsel %vm79, %v431, %v736
    %v911 = vsel %vm79, %v432, %v737
    %v912 = vsel %vm79, %v433, %v738
    %v913 = vsel %vm79, %v434, %v739
    %v914 = vsel %vm764, %v741, %v765
    %v915 = vsel %vm764, %v743, %v766
    %v916 = vsel %vm764, %v745, %v767
    %v917 = vsel %vm764, %v747, %v768
    %v918 = vsel %vm793, %v770, %v794
    %v919 = vsel %vm793, %v772, %v795
    %v920 = vsel %vm793, %v774, %v796
    %v921 = vsel %vm793, %v776, %v797
    %v922 = vsel %vm79, %v202, %v822
    %v923 = vsel %vm79, %v203, %v823
    %v924 = vsel %vm79, %v204, %v824
    %v925 = vsel %vm79, %v205, %v825
    %v926 = vsel %vm764, %v827, %v850
    %v927 = vsel %vm764, %v829, %v851
    %v928 = vsel %vm764, %v831, %v852
    %v929 = vsel %vm764, %v833, %v853
    %v930 = vsel %vm793, %v855, %v878
    %v931 = vsel %vm793, %v857, %v879
    %v932 = vsel %vm793, %v859, %v880
    %v933 = vsel %vm793, %v861, %v881
    %v934 = vsel %vm79, %v724, %v902
    %v935 = vsel %vm79, %v725, %v903
    %v936 = vsel %vm79, %v726, %v904
    %v937 = vsel %vm79, %v727, %v905
    %v938 = vld [vmem:[%s5] sm:$0xf]
    %v939 = vld [vmem:[%s5 + $0x4] sm:$0xf]
    %v940 = vld [vmem:[%s5 + $0x8] sm:$0xf]
    %v941 = vpack.c.bf16 %v910, %v427
    %v942 = vpack.c.bf16 %v911, %v428
    %v943 = vpack.c.bf16 %v912, %v429
    %v944 = vpack.c.bf16 %v913, %v430
    %v945 = vpack.c.bf16 %v918, %v914
    %v946 = vpack.c.bf16 %v919, %v915
    %v947 = vpack.c.bf16 %v920, %v916
    %v948 = vpack.c.bf16 %v921, %v917
    %v949 = vpack.c.bf16 %v198, %v799
    %v950 = vpack.c.bf16 %v199, %v801
    %v951 = vpack.c.bf16 %v200, %v803
    %v952 = vpack.c.bf16 %v201, %v805
    %v953 = vpack.c.bf16 %v926, %v922
    %v954 = vpack.c.bf16 %v927, %v923
    %v955 = vpack.c.bf16 %v928, %v924
    %v956 = vpack.c.bf16 %v929, %v925
    %v957 = vpack.c.bf16 %v883, %v930
    %v958 = vpack.c.bf16 %v885, %v931
    %v959 = vpack.c.bf16 %v887, %v932
    %v960 = vpack.c.bf16 %v889, %v933
    %v961 = vpack.c.bf16 %v934, %v720
    %v962 = vpack.c.bf16 %v935, %v721
    %v963 = vpack.c.bf16 %v936, %v722
    %v964 = vpack.c.bf16 %v937, %v723
    %v965 = vld [vmem:[%s6] sm:$0xff]
    %v966 = vld [vmem:[%s6 + $0x8] sm:$0xff]
    %v967 = vld [vmem:[%s6 + $0x10] sm:$0xff]
    %969 = vset.pattern.permute.xlu0 0
    %970 = vperm.xlu0 %969, %v965
    %v971 = vpop.permute.xlu0 %970
    %974 = vset.pattern.permute.xlu0 0
    %975 = vperm.xlu0 %974, %v966
    %v976 = vpop.permute.xlu0 %975
    %979 = vset.pattern.permute.xlu0 0
    %980 = vperm.xlu0 %979, %v967
    %v981 = vpop.permute.xlu0 %980
    %v986 = vunpack.c.l.b16 %v938
    %v987 = vunpack.c.l.b16 %v939
    %v988 = vunpack.c.l.b16 %v940
    %v989 = vpack.c.b16 %v987, %v986
    %v990 = vpack.c.b16 %v988, %v988
    %vm991 = vcmask 769024
    %v993 = vsel %vm991, %v989, 0
    %v996 = vsel %vm991, %v990, 0
    %vm998 = vcmask 1046528
    %v1000 = vsel %vm998, %v961, 0
    %v1003 = vsel %vm998, %v962, 0
    %v1006 = vsel %vm998, %v963, 0
    %v1009 = vsel %vm998, %v964, 0
    %1011 = vmatprep.subr.bf16.mxu0 %v942
    %1012 = vmatpush1.bf16.msra.mxu0 %v941
    %1013 = vmatprep.subr.bf16.mxu0 %v946
    %1014 = vmatpush1.bf16.msra.mxu0 %v945
    %1015 = vmatprep.subr.bf16.mxu0 %v950
    %1016 = vmatpush1.bf16.msra.mxu0 %v949
    %1017 = vmatprep.subr.bf16.mxu0 %v954
    %1018 = vmatpush1.bf16.msra.mxu0 %v953
    %1019 = vmatprep.subr.bf16.mxu0 %v958
    %1020 = vmatpush1.bf16.msra.mxu0 %v957
    %1021 = vmatprep.subr.bf16.mxu0 %v1003
    %1022 = vmatpush1.bf16.msra.mxu0 %v1000
    %1023 = vmatprep.subr.bf16.mxu0 0
    %1024 = vmatpush1.bf16.msra.mxu0 0
    %1025 = vmatprep.subr.bf16.mxu0 0
    %1026 = vmatpush1.bf16.msra.mxu0 0
    %1027 = vmatprep.subr.bf16.mxu0 0
    %1028 = vmatpush1.bf16.msra.mxu0 0
    %1029 = vmatprep.subr.bf16.mxu0 0
    %1030 = vmatpush1.bf16.msra.mxu0 0
    %1031 = vmatprep.subr.bf16.mxu0 0
    %1032 = vmatpush1.bf16.msra.mxu0 0
    %1033 = vmatprep.subr.bf16.mxu0 0
    %1034 = vmatpush1.bf16.msra.mxu0 0
    %1035 = vmatprep.subr.bf16.mxu0 0
    %1036 = vmatpush1.bf16.msra.mxu0 0
    %1037 = vmatprep.subr.bf16.mxu0 0
    %1038 = vmatpush1.bf16.msra.mxu0 0
    %1039 = vmatprep.subr.bf16.mxu0 0
    %1040 = vmatpush1.bf16.msra.mxu0 0
    %1041 = vmatprep.subr.bf16.mxu0 0
    %1042 = vmatpush1.bf16.msra.mxu0 0
    %1043 = vmatprep.mubr.bf16.mxu0 0
    %1044 = vmatmul.mubr.bf16.gmra.mrb[0].mxu0 %v993
    %v1045 = vpop.f32.mrb[0].mxu0
    %v1046 = vadd.f32 %v971, %v1045
    %v1047 = vpop.f32.mrb[0].mxu0
    %v1048 = vadd.f32 %v971, %v1047
    %v1049 = vpop.f32.mrb[0].mxu0
    %v1050 = vadd.f32 %v976, %v1049
    %v1051 = vpop.f32.mrb[0].mxu0
    %v1052 = vadd.f32 %v976, %v1051
    %1053 = vmatprep.mubr.bf16.mxu0 0
    %1054 = vmatmul.mubr.bf16.gmra.mrb[0].mxu0 %v996
    %v1055 = vpop.f32.mrb[0].mxu0
    %v1056 = vadd.f32 %v981, %v1055
    %v1057 = vpop.f32.mrb[0].mxu0
    %v1058 = vadd.f32 %v981, %v1057
    %v1059 = vpop.f32.mrb[0].mxu0
    %v1060 = vpop.f32.mrb[0].mxu0
    %1061 = vdwg.mxu0
    %1062 = vmatprep.subr.bf16.mxu0 %v944
    %1063 = vmatpush1.bf16.msra.mxu0 %v943
    %1064 = vmatprep.subr.bf16.mxu0 %v948
    %1065 = vmatpush1.bf16.msra.mxu0 %v947
    %1066 = vmatprep.subr.bf16.mxu0 %v952
    %1067 = vmatpush1.bf16.msra.mxu0 %v951
    %1068 = vmatprep.subr.bf16.mxu0 %v956
    %1069 = vmatpush1.bf16.msra.mxu0 %v955
    %1070 = vmatprep.subr.bf16.mxu0 %v960
    %1071 = vmatpush1.bf16.msra.mxu0 %v959
    %1072 = vmatprep.subr.bf16.mxu0 %v1009
    %1073 = vmatpush1.bf16.msra.mxu0 %v1006
    %1074 = vmatprep.subr.bf16.mxu0 0
    %1075 = vmatpush1.bf16.msra.mxu0 0
    %1076 = vmatprep.subr.bf16.mxu0 0
    %1077 = vmatpush1.bf16.msra.mxu0 0
    %1078 = vmatprep.subr.bf16.mxu0 0
    %1079 = vmatpush1.bf16.msra.mxu0 0
    %1080 = vmatprep.subr.bf16.mxu0 0
    %1081 = vmatpush1.bf16.msra.mxu0 0
    %1082 = vmatprep.subr.bf16.mxu0 0
    %1083 = vmatpush1.bf16.msra.mxu0 0
    %1084 = vmatprep.subr.bf16.mxu0 0
    %1085 = vmatpush1.bf16.msra.mxu0 0
    %1086 = vmatprep.subr.bf16.mxu0 0
    %1087 = vmatpush1.bf16.msra.mxu0 0
    %1088 = vmatprep.subr.bf16.mxu0 0
    %1089 = vmatpush1.bf16.msra.mxu0 0
    %1090 = vmatprep.subr.bf16.mxu0 0
    %1091 = vmatpush1.bf16.msra.mxu0 0
    %1092 = vmatprep.subr.bf16.mxu0 0
    %1093 = vmatpush1.bf16.msra.mxu0 0
    %1094 = vmatprep.mubr.bf16.mxu0 0
    %1095 = vmatmul.mubr.bf16.gmra.mrb[0].mxu0 %v993
    %v1096 = vpop.f32.mrb[0].mxu0
    %v1097 = vadd.f32 %v971, %v1096
    %v1098 = vpop.f32.mrb[0].mxu0
    %v1099 = vadd.f32 %v971, %v1098
    %v1100 = vpop.f32.mrb[0].mxu0
    %v1101 = vadd.f32 %v976, %v1100
    %v1102 = vpop.f32.mrb[0].mxu0
    %v1103 = vadd.f32 %v976, %v1102
    %1104 = vmatprep.mubr.bf16.mxu0 0
    %1105 = vmatmul.mubr.bf16.gmra.mrb[0].mxu0 %v996
    %v1106 = vpop.f32.mrb[0].mxu0
    %v1107 = vadd.f32 %v981, %v1106
    %v1108 = vpop.f32.mrb[0].mxu0
    %v1109 = vadd.f32 %v981, %v1108
    %v1110 = vpop.f32.mrb[0].mxu0
    %v1111 = vpop.f32.mrb[0].mxu0
    %1112 = vdwg.mxu0
    %v1113 = vmax.f32 %v1046, 0.0
    %v1114 = vmax.f32 %v1048, 0.0
    %v1115 = vmax.f32 %v1097, 0.0
    %v1116 = vmax.f32 %v1099, 0.0
    %v1117 = vmax.f32 %v1050, 0.0
    %v1118 = vmax.f32 %v1052, 0.0
    %v1119 = vmax.f32 %v1101, 0.0
    %v1120 = vmax.f32 %v1103, 0.0
    %v1121 = vmax.f32 %v1056, 0.0
    %v1122 = vmax.f32 %v1058, 0.0
    %v1123 = vmax.f32 %v1107, 0.0
    %v1124 = vmax.f32 %v1109, 0.0
    %1125 = vst [vmem:[#allocation2] sm:$0xff] %v194
    %1126 = vst [vmem:[#allocation2 + $0x8] sm:$0xff] %v195
    %1127 = vst [vmem:[#allocation2 + $0x10] sm:$0xff] %v1113
    %1128 = vst [vmem:[#allocation2 + $0x18] sm:$0xff] %v1114
    %1129 = vst [vmem:[#allocation2 + $0x20] sm:$0xff] %v1117
    %1130 = vst [vmem:[#allocation2 + $0x28] sm:$0xff] %v1118
    %1131 = vst [vmem:[#allocation2 + $0x30] sm:$0xff] %v1121
    %1132 = vst [vmem:[#allocation2 + $0x38] sm:$0xff] %v1122
    %s1133 = scalar_lea.vmem [#allocation2], 64
    %1134 = vst [vmem:[%s1133] sm:$0xff] %v196
    %1135 = vst [vmem:[%s1133 + $0x8] sm:$0xff] %v197
    %1136 = vst [vmem:[%s1133 + $0x10] sm:$0xff] %v1115
    %1137 = vst [vmem:[%s1133 + $0x18] sm:$0xff] %v1116
    %1138 = vst [vmem:[%s1133 + $0x20] sm:$0xff] %v1119
    %1139 = vst [vmem:[%s1133 + $0x28] sm:$0xff] %v1120
    %1140 = vst [vmem:[%s1133 + $0x30] sm:$0xff] %v1123
    %1141 = vst [vmem:[%s1133 + $0x38] sm:$0xff] %v1124
    // Predicated region
    $region30: #{tpu_custom_call.1} parent=1 // pred_check
      _
    $region31: #{tpu_custom_call.1} parent=1 // pred_check_branch
      %1143 = sbr.rel (0) target = $region33
    $region32: #{tpu_custom_call.1} parent=1 // pred_region
      %s1145 = ssub.s32 2048, 2048
      %1146 = vsyncadd [#allocation3], %s1145
      %s1147 = sshll.u32 [#allocation2], 4
      %s1148 = int_to_ptr.vmem [resolvable:$true] %s1147
      %1153 = dma.vmem_to_hbm [thread:$0]  %s1148, 2048, %s7, [#allocation3], 256, 256, 16
    $region33: #{tpu_custom_call.1} parent=1 // pred_fallthru
      _
    // Predicated region
    $region34: #{tpu_custom_call.1} parent=1 // pred_check
      _
    $region35: #{tpu_custom_call.1} parent=1 // pred_check_branch
      %1155 = sbr.rel (0) target = $region37
    $region36: #{tpu_custom_call.1} parent=1 // pred_region
      %1156 = dma.done [#allocation3], 2048
    $region37: #{tpu_custom_call.1} parent=1 // pred_fallthru
      _
    %1157 = vsyncpa [#allocation3], 1

</llo_original>
